<compile_context>
chip_gen: v6e
topology: v6e:2x2x1
jax: 0.10.0
libtpu: 0.0.40
codegen_flags: <defaults>
</compile_context>

<pallas_src>
import jax
import jax.numpy as jnp
from jax.experimental import pallas as pl
from jax.experimental.pallas import tpu as pltpu

HIDDEN = 64
F32 = jnp.float32
BF16 = jnp.bfloat16


def _conv1_kernel(a_ref, u_ref, w_ref, vec_ref, out_ref):
    """GINConv layer 1 (+ reassociated layer-2 input projection) for one row tile.

    a_ref:   (tm, N)   int8   row tile of A_hat
    u_ref:   (N, 64)   bf16   u1 = x @ w11   (reassociated first matmul)
    w_ref:   (128, 64) bf16   rows = [w12 ; w21]
    vec_ref: (8, 64)   f32    rows = [b11, b12, bn1_scale, bn1_shift, pad...]
    out_ref: (tm, 64)  bf16   u2 = BN1(ReLU(ReLU(A@x@w11 + b11) @ w12 + b12)) @ w21
    """
    a = a_ref[...].astype(BF16)                               # int8 -> bf16 (exact)
    z = jnp.dot(a, u_ref[...], preferred_element_type=F32)
    h = jnp.maximum(z + vec_ref[0:1, :], 0.0)
    h = jnp.dot(h.astype(BF16), w_ref[0:HIDDEN, :], preferred_element_type=F32)
    h = jnp.maximum(h + vec_ref[1:2, :], 0.0)
    h = h * vec_ref[2:3, :] + vec_ref[3:4, :]                 # folded BatchNorm1d
    # Reassociated layer-2 projection: A @ (h1 @ w21) == (A @ h1) @ w21 exactly.
    out_ref[...] = jnp.dot(h.astype(BF16), w_ref[HIDDEN:2 * HIDDEN, :],
                           preferred_element_type=F32).astype(BF16)


def _conv2_pool_kernel(a_ref, u_ref, w_ref, vec_ref, p_ref, out_ref):
    """GINConv layer 2 + global_add_pool for one row tile, accumulated per split.

    a_ref:   (tm, N)   int8   row tile of A_hat
    u_ref:   (N, 64)   bf16   u2 = h1 @ w21 (produced by call 1)
    w_ref:   (64, 64)  bf16   w22
    vec_ref: (8, 64)   f32    rows = [b21, b22, bn2_scale, bn2_shift, pad...]
    p_ref:   (G, tm)   bf16   column tile of the one-hot pooling matrix
    out_ref: (G, 64)   f32    resident pooled partial for this split (accumulator)
    """
    i = pl.program_id(1)                                      # reduction step in split

    @pl.when(i == 0)
    def _():
        out_ref[...] = jnp.zeros_like(out_ref)

    a = a_ref[...].astype(BF16)
    z = jnp.dot(a, u_ref[...], preferred_element_type=F32)    # == (A @ h1) @ w21
    h = jnp.maximum(z + vec_ref[0:1, :], 0.0)
    h = jnp.dot(h.astype(BF16), w_ref[...], preferred_element_type=F32)
    h = jnp.maximum(h + vec_ref[1:2, :], 0.0)
    h = h * vec_ref[2:3, :] + vec_ref[3:4, :]                 # folded BatchNorm1d

    # global_add_pool partial: accumulate P_tile @ h_tile into the resident block.
    out_ref[...] += jnp.dot(p_ref[...], h.astype(BF16), preferred_element_type=F32)


def _fold_bn(gamma, beta, mean, var, bn_eps=1e-5):
    s = gamma / jnp.sqrt(var + bn_eps)
    t = beta - mean * s
    return s, t


def _pack_rows(rows, n_rows=8):
    m = jnp.stack([r.astype(F32) for r in rows], axis=0)
    pad = n_rows - m.shape[0]
    if pad:
        m = jnp.concatenate([m, jnp.zeros((pad, m.shape[1]), F32)], axis=0)
    return m


def gin_forward(x, edge_index, batch, params, num_graphs,
                tile_rows=128, num_splits=2):
    """Pallas implementation of GIN.forward(x, edge_index, batch)."""
    n = x.shape[0]
    chunk = num_splits * tile_rows
    n_pad = max(chunk, ((n + chunk - 1) // chunk) * chunk)
    grid_rows = n_pad // tile_rows
    tiles_per_split = grid_rows // num_splits

    src = edge_index[0].astype(jnp.int32)
    dst = edge_index[1].astype(jnp.int32)

    # Dense GIN operator A_hat = A + (1 + eps) I, eps = 0, built with ONE scatter
    # (self-loop pairs appended) directly into int8 (exact for multiplicity <= 127).
    loops = jnp.arange(n_pad, dtype=jnp.int32)
    rows = jnp.concatenate([dst, loops])
    cols = jnp.concatenate([src, loops])
    a_hat = jnp.zeros((n_pad, n_pad), jnp.int8).at[rows, cols].add(
        jnp.ones(rows.shape, jnp.int8))

    # One-hot pooling matrix (padded nodes assigned to no graph).
    batch_pad = jnp.concatenate(
        [batch.astype(jnp.int32), jnp.full((n_pad - n,), -1, jnp.int32)])
    p = (batch_pad[None, :] ==
         jnp.arange(num_graphs, dtype=jnp.int32)[:, None]).astype(BF16)

    s1, t1 = _fold_bn(*params["bn1"])
    s2, t2 = _fold_bn(*params["bn2"])

    # Reassociated first layer: u1 = x @ w11 (the F=7-lane intermediate never
    # exists inside a kernel).
    x_pad = jnp.zeros((n_pad, x.shape[1]), F32).at[:n].set(x.astype(F32))
    u1 = jnp.dot(x_pad, params["w11"]).astype(BF16)

    vec1 = _pack_rows([params["b11"], params["b12"], s1, t1])
    vec2 = _pack_rows([params["b21"], params["b22"], s2, t2])
    w1_slab = jnp.concatenate([params["w12"], params["w21"]], axis=0).astype(BF16)
    w22 = params["w22"].astype(BF16)

    # Explicit VMEM budget (double-buffered worst case), clamped to <= smallest
    # per-generation physical VMEM (64 MiB on v7x).
    need = (2 * tile_rows * n_pad                      # A tile, int8
            + 2 * n_pad * HIDDEN * 2                   # u slab, bf16
            + 2 * 2 * HIDDEN * HIDDEN * 2              # weight slabs
            + 2 * 8 * HIDDEN * 4                       # vec slabs
            + 2 * num_graphs * tile_rows * 2           # P tile
            + 2 * tile_rows * HIDDEN * 2               # call-1 out tile
            + 2 * num_graphs * HIDDEN * 4)             # call-2 out block
    vmem_limit = int(min(64 * 1024 * 1024, max(32 * 1024 * 1024, 2 * need)))

    def const2(shape):
        return pl.BlockSpec(shape, lambda i: (0, 0))

    # ---- call 1: GINConv layer 1 (+ w21 projection), row-tiled, megacore ------
    flops1 = 2 * n_pad * n_pad * HIDDEN + 4 * n_pad * HIDDEN * HIDDEN
    bytes1 = (a_hat.size + u1.size * 2 + w1_slab.size * 2 + vec1.size * 4
              + n_pad * HIDDEN * 2)
    u2 = pl.pallas_call(
        _conv1_kernel,
        out_shape=jax.ShapeDtypeStruct((n_pad, HIDDEN), BF16),
        grid=(grid_rows,),
        in_specs=[pl.BlockSpec((tile_rows, n_pad), lambda i: (i, 0)),
                  const2((n_pad, HIDDEN)),
                  const2((2 * HIDDEN, HIDDEN)),
                  const2((8, HIDDEN))],
        out_specs=pl.BlockSpec((tile_rows, HIDDEN), lambda i: (i, 0)),
        compiler_params=pltpu.CompilerParams(
            dimension_semantics=("parallel",),
            vmem_limit_bytes=vmem_limit),
        cost_estimate=pl.CostEstimate(flops=flops1, transcendentals=0,
                                      bytes_accessed=bytes1),
    )(a_hat, u1, w1_slab, vec1)

    # ---- call 2: GINConv layer 2 + global_add_pool, split-parallel reduction ---
    flops2 = (2 * n_pad * n_pad * HIDDEN + 2 * n_pad * HIDDEN * HIDDEN
              + 2 * num_graphs * n_pad * HIDDEN)
    bytes2 = (a_hat.size + u2.size * 2 + w22.size * 2 + vec2.size * 4
              + p.size * 2 + num_splits * num_graphs * HIDDEN * 4)
    partials = pl.pallas_call(
        _conv2_pool_kernel,
        out_shape=jax.ShapeDtypeStruct((num_splits, num_graphs, HIDDEN), F32),
        grid=(num_splits, tiles_per_split),
        in_specs=[pl.BlockSpec((tile_rows, n_pad),
                               lambda s, i: (s * tiles_per_split + i, 0)),
                  pl.BlockSpec((n_pad, HIDDEN), lambda s, i: (0, 0)),
                  pl.BlockSpec((HIDDEN, HIDDEN), lambda s, i: (0, 0)),
                  pl.BlockSpec((8, HIDDEN), lambda s, i: (0, 0)),
                  pl.BlockSpec((num_graphs, tile_rows),
                               lambda s, i: (0, s * tiles_per_split + i))],
        out_specs=pl.BlockSpec((None, num_graphs, HIDDEN),
                               lambda s, i: (s, 0, 0)),
        compiler_params=pltpu.CompilerParams(
            dimension_semantics=("parallel", "arbitrary"),
            vmem_limit_bytes=vmem_limit),
        cost_estimate=pl.CostEstimate(flops=flops2, transcendentals=0,
                                      bytes_accessed=bytes2),
    )(a_hat, u2, w22, vec2, p)

    # Sum per-split pooled partials + tiny final Linear ((G,64)x(64,64)) in f32 glue.
    pooled = partials.sum(axis=0)
    return pooled @ params["wl"] + params["bl"]


def gin_forward_ref(x, edge_index, batch, params, num_graphs):
    """Pure-JAX f32 reference with the original module's semantics."""
    n = x.shape[0]
    src, dst = edge_index[0], edge_index[1]
    a_hat = jnp.zeros((n, n), F32).at[dst, src].add(1.0) + jnp.eye(n, dtype=F32)
    p = (batch[None, :] ==
         jnp.arange(num_graphs, dtype=batch.dtype)[:, None]).astype(F32)
    s1, t1 = _fold_bn(*params["bn1"])
    s2, t2 = _fold_bn(*params["bn2"])

    h = a_hat @ x
    h = jnp.maximum(h @ params["w11"] + params["b11"], 0.0)
    h = jnp.maximum(h @ params["w12"] + params["b12"], 0.0)
    h = h * s1 + t1
    h = a_hat @ h
    h = jnp.maximum(h @ params["w21"] + params["b21"], 0.0)
    h = jnp.maximum(h @ params["w22"] + params["b22"], 0.0)
    h = h * s2 + t2
    g = p @ h
    return g @ params["wl"] + params["bl"]


def make_params(key, num_features):
    ks = jax.random.split(key, 16)

    def lin(k, fan_in, fan_out, scale=0.1):
        kw, kb = jax.random.split(k)
        return (scale * jax.random.normal(kw, (fan_in, fan_out), F32),
                scale * jax.random.normal(kb, (fan_out,), F32))

    def bn(k):
        kg, kb, km, kv = jax.random.split(k, 4)
        gamma = 1.0 + 0.1 * jax.random.normal(kg, (HIDDEN,), F32)
        beta = 0.1 * jax.random.normal(kb, (HIDDEN,), F32)
        mean = 0.1 * jax.random.normal(km, (HIDDEN,), F32)
        var = 1.0 + 0.1 * jnp.abs(jax.random.normal(kv, (HIDDEN,), F32))
        return (gamma, beta, mean, var)

    w11, b11 = lin(ks[0], num_features, HIDDEN)
    w12, b12 = lin(ks[1], HIDDEN, HIDDEN)
    w21, b21 = lin(ks[2], HIDDEN, HIDDEN)
    w22, b22 = lin(ks[3], HIDDEN, HIDDEN)
    wl, bl = lin(ks[4], HIDDEN, HIDDEN)
    return dict(w11=w11, b11=b11, w12=w12, b12=b12, bn1=bn(ks[5]),
                w21=w21, b21=b21, w22=w22, b22=b22, bn2=bn(ks[6]),
                wl=wl, bl=bl)


if __name__ == "__main__":
    key = jax.random.PRNGKey(0)
    k_x, k_p = jax.random.split(key)

    NUM_FEATURES = 7        # MUTAG node feature dim
    NODES_PER_GRAPH = 64
    NUM_GRAPHS = 4
    N = NODES_PER_GRAPH * NUM_GRAPHS        # 256 nodes -> 2 row tiles of 128

    # Deterministic graph structure: a bidirected ring inside each graph.
    edges = []
    for g in range(NUM_GRAPHS):
        base = g * NODES_PER_GRAPH
        for i in range(NODES_PER_GRAPH):
            j = (i + 1) % NODES_PER_GRAPH
            edges.append((base + i, base + j))
            edges.append((base + j, base + i))
    edge_index = jnp.array(edges, dtype=jnp.int32).T                           # (2, 512)
    batch = jnp.repeat(jnp.arange(NUM_GRAPHS, dtype=jnp.int32), NODES_PER_GRAPH)
    x = jax.random.normal(k_x, (N, NUM_FEATURES), F32)

    params = make_params(k_p, NUM_FEATURES)

    out = gin_forward(x, edge_index, batch, params, NUM_GRAPHS,
                      tile_rows=128, num_splits=2)
    out = jax.block_until_ready(out)

    ref = gin_forward_ref(x, edge_index, batch, params, NUM_GRAPHS)
    assert out.shape == (NUM_GRAPHS, HIDDEN)
    err = float(jnp.max(jnp.abs(out - ref)))
    scale = float(jnp.max(jnp.abs(ref)))
    # bf16 MXU operands (f32 accumulation) => looser tolerance than pure f32.
    assert err <= 3e-2 * scale + 1e-2, f"Pallas output mismatch: err={err}, scale={scale}"

    print("KERNEL_OK")
</pallas_src>

<mosaic_0001>
module attributes {stable_mosaic.version = 11 : i64} {
  func.func @_conv1_kernel(%arg0: i32, %arg1: memref<128x256xi8, #tpu.memory_space<vmem>>, %arg2: memref<256x64xbf16, #tpu.memory_space<vmem>>, %arg3: memref<128x64xbf16, #tpu.memory_space<vmem>>, %arg4: memref<8x64xf32, #tpu.memory_space<vmem>>, %arg5: memref<128x64xbf16, #tpu.memory_space<vmem>>) attributes {dimension_semantics = [#tpu.dimension_semantics<parallel>], iteration_bounds = array<i64: 2>, scalar_prefetch = 0 : i64, scratch_operands = 0 : i64, tpu.core_type = #tpu.core_type<tc>, window_params = [{transform_indices = @transform_0, window_bounds = array<i64: 128, 256>}, {pipeline_mode = #tpu.pipeline_mode<synchronous>, transform_indices = @transform_1, window_bounds = array<i64: 256, 64>}, {pipeline_mode = #tpu.pipeline_mode<synchronous>, transform_indices = @transform_2, window_bounds = array<i64: 128, 64>}, {pipeline_mode = #tpu.pipeline_mode<synchronous>, transform_indices = @transform_3, window_bounds = array<i64: 8, 64>}, {transform_indices = @transform_4, window_bounds = array<i64: 128, 64>}]} {
    %c0 = arith.constant 0 : index
    %c0_0 = arith.constant 0 : index
    %0 = vector.load %arg1[%c0, %c0_0] : memref<128x256xi8, #tpu.memory_space<vmem>>, vector<128x256xi8>
    %1 = arith.sitofp %0 : vector<128x256xi8> to vector<128x256xbf16>
    %c0_1 = arith.constant 0 : index
    %c0_2 = arith.constant 0 : index
    %2 = vector.load %arg2[%c0_1, %c0_2] : memref<256x64xbf16, #tpu.memory_space<vmem>>, vector<256x64xbf16>
    %cst = arith.constant dense<0.000000e+00> : vector<128x64xf32>
    %3 = tpu.matmul %1, %2, %cst {dimension_numbers = #tpu.dot_dimension_numbers<[1], [0], [0], [1], [0, 0, 1, 1], [], []>} : vector<128x256xbf16>, vector<256x64xbf16>, vector<128x64xf32> -> vector<128x64xf32>
    %c0_3 = arith.constant 0 : index
    %c0_4 = arith.constant 0 : index
    %4 = vector.load %arg4[%c0_3, %c0_4] : memref<8x64xf32, #tpu.memory_space<vmem>>, vector<1x64xf32>
    %5 = vector.broadcast %4 : vector<1x64xf32> to vector<128x64xf32>
    %6 = arith.addf %3, %5 : vector<128x64xf32>
    %cst_5 = arith.constant 0.000000e+00 : f32
    %7 = vector.broadcast %cst_5 : f32 to vector<128x64xf32>
    %8 = arith.maximumf %6, %7 : vector<128x64xf32>
    %9 = arith.truncf %8 : vector<128x64xf32> to vector<128x64xbf16>
    %c0_6 = arith.constant 0 : index
    %c0_7 = arith.constant 0 : index
    %10 = vector.load %arg3[%c0_6, %c0_7] : memref<128x64xbf16, #tpu.memory_space<vmem>>, vector<64x64xbf16>
    %cst_8 = arith.constant dense<0.000000e+00> : vector<128x64xf32>
    %11 = tpu.matmul %9, %10, %cst_8 {dimension_numbers = #tpu.dot_dimension_numbers<[1], [0], [0], [1], [0, 0, 1, 1], [], []>} : vector<128x64xbf16>, vector<64x64xbf16>, vector<128x64xf32> -> vector<128x64xf32>
    %c1 = arith.constant 1 : index
    %c0_9 = arith.constant 0 : index
    %12 = vector.load %arg4[%c1, %c0_9] : memref<8x64xf32, #tpu.memory_space<vmem>>, vector<1x64xf32>
    %13 = vector.broadcast %12 : vector<1x64xf32> to vector<128x64xf32>
    %14 = arith.addf %11, %13 : vector<128x64xf32>
    %cst_10 = arith.constant 0.000000e+00 : f32
    %15 = vector.broadcast %cst_10 : f32 to vector<128x64xf32>
    %16 = arith.maximumf %14, %15 : vector<128x64xf32>
    %c2 = arith.constant 2 : index
    %c0_11 = arith.constant 0 : index
    %17 = vector.load %arg4[%c2, %c0_11] : memref<8x64xf32, #tpu.memory_space<vmem>>, vector<1x64xf32>
    %18 = vector.broadcast %17 : vector<1x64xf32> to vector<128x64xf32>
    %19 = arith.mulf %16, %18 : vector<128x64xf32>
    %c3 = arith.constant 3 : index
    %c0_12 = arith.constant 0 : index
    %20 = vector.load %arg4[%c3, %c0_12] : memref<8x64xf32, #tpu.memory_space<vmem>>, vector<1x64xf32>
    %21 = vector.broadcast %20 : vector<1x64xf32> to vector<128x64xf32>
    %22 = arith.addf %19, %21 : vector<128x64xf32>
    %23 = arith.truncf %22 : vector<128x64xf32> to vector<128x64xbf16>
    %c64 = arith.constant 64 : index
    %c0_13 = arith.constant 0 : index
    %24 = vector.load %arg3[%c64, %c0_13] : memref<128x64xbf16, #tpu.memory_space<vmem>>, vector<64x64xbf16>
    %cst_14 = arith.constant dense<0.000000e+00> : vector<128x64xf32>
    %25 = tpu.matmul %23, %24, %cst_14 {dimension_numbers = #tpu.dot_dimension_numbers<[1], [0], [0], [1], [0, 0, 1, 1], [], []>} : vector<128x64xbf16>, vector<64x64xbf16>, vector<128x64xf32> -> vector<128x64xf32>
    %26 = arith.truncf %25 : vector<128x64xf32> to vector<128x64xbf16>
    %c0_15 = arith.constant 0 : index
    %c0_16 = arith.constant 0 : index
    %27 = vector.load %arg5[%c0_15, %c0_16] : memref<128x64xbf16, #tpu.memory_space<vmem>>, vector<128x64xbf16>
    tpu.vector_store %arg5[%c0_15, %c0_16], %26 {strides = array<i32>} : memref<128x64xbf16, #tpu.memory_space<vmem>>, vector<128x64xbf16>,
    return
  }
  func.func @transform_0(%arg0: i32) -> (i32, i32) {
    %c0_i32 = arith.constant 0 : i32
    %c0_i32_0 = arith.constant 0 : i32
    return %arg0, %c0_i32 : i32, i32
  }
  func.func @transform_1(%arg0: i32) -> (i32, i32) {
    %c0_i32 = arith.constant 0 : i32
    %c0_i32_0 = arith.constant 0 : i32
    %c0_i32_1 = arith.constant 0 : i32
    return %c0_i32, %c0_i32_0 : i32, i32
  }
  func.func @transform_2(%arg0: i32) -> (i32, i32) {
    %c0_i32 = arith.constant 0 : i32
    %c0_i32_0 = arith.constant 0 : i32
    %c0_i32_1 = arith.constant 0 : i32
    return %c0_i32, %c0_i32_0 : i32, i32
  }
  func.func @transform_3(%arg0: i32) -> (i32, i32) {
    %c0_i32 = arith.constant 0 : i32
    %c0_i32_0 = arith.constant 0 : i32
    %c0_i32_1 = arith.constant 0 : i32
    return %c0_i32, %c0_i32_0 : i32, i32
  }
  func.func @transform_4(%arg0: i32) -> (i32, i32) {
    %c0_i32 = arith.constant 0 : i32
    %c0_i32_0 = arith.constant 0 : i32
    return %arg0, %c0_i32 : i32, i32
  }
}

</mosaic_0001>

<llo_original>
// kernel: tpu_custom_call.1
$region0: #{tpu_custom_call.1}
  #allocation0 [shape = 'u32[]', space=smem, size = 0x4, offset = 0x4, fixed_abs, tag = 'smem constant byte address 0x4 - core index']
  #allocation1 [shape = 'u32[144,128]{1,0:T(1,128)}', space=vmem, size = 0x12000, scoped, tag = 'internal scratch']
  %s0 = inlined_call_operand.vmem [shape: s8[256,256], index: 0, kind: input, shape index: {}]
  %s1 = inlined_call_operand.vmem [shape: bf16[256,64], index: 1, kind: input, shape index: {}]
  %s2 = inlined_call_operand.vmem [shape: bf16[128,64], index: 2, kind: input, shape index: {}]
  %s3 = inlined_call_operand.vmem [shape: f32[8,64], index: 3, kind: input, shape index: {}]
  %s4 = inlined_call_operand.vmem [shape: bf16[256,64], index: 4, kind: output, shape index: {}]
  %s5 = sld [smem:[#allocation0]]
  $region49: #{tpu_custom_call.1} parent=0
    _
  %s7 = ssub.s32 1, %s5
  %s8 = scalar_select 0, %s7, %s5
  loop: start=0, step=1, limit=4
  $region2: #{tpu_custom_call.1} parent=0 // loop_pre_header
    _
  $region3: #{tpu_custom_call.1} parent=0 // loop_header
    %s10 = sphi 0, %s14
    %p11 = scmp.ge.s32.totalorder %s10, 4
    %s20 = sphi 0, %s22
    %s23 = sphi 0, %s20
    %s24 = sphi 0, %s23
    %s40 = sphi 0, %s24
    %s44 = sphi 0, %s44
    %s46 = sphi 0, %s44
    %s47 = sphi 0, %s46
    %s61 = sphi 0, %s47
    %s65 = sphi 0, %s65
    %s67 = sphi 0, %s65
    %s68 = sphi 0, %s67
    %s82 = sphi 0, %s68
    %s86 = sphi 0, %s86
    %s88 = sphi 0, %s86
    %s89 = sphi 0, %s88
    %s103 = sphi 0, %s89
    %s109 = sphi 0, %s111
    %s112 = sphi 0, %s109
    %s113 = sphi 0, %s112
    %s129 = sphi 0, %s113
  $region4: #{tpu_custom_call.1} parent=0 // loop_header_branch
    %13 = sbr.rel (%p11) target = $region8
  $region5: #{tpu_custom_call.1} parent=0 // loop_body
    %s15 = ssub.s32 %s10, 1
    %s16 = ssub.s32 %s10, 2
    %s17 = sadd.s32 %s10, 1
    %s18 = ssub.s32 %s10, %s17
    %p19 = scmp.eq.s32.totalorder %s18, 0
    %s21 = sadd.s32 %s20, 1
    %s22 = scalar_select %p19, %s20, %s21
    %p25 = pneg %p19
    %p26 = scmp.eq.s32.totalorder %s10, 1
    %p27 = por %p25, %p26
    %p28 = scmp.ne.s32.totalorder %s20, %s23
    %p29 = scmp.eq.s32.totalorder %s10, 0
    %p30 = por %p28, %p29
    %p31 = scmp.ne.s32.totalorder %s20, %s23
    %p32 = scmp.eq.s32.totalorder %s15, 1
    %p33 = por %p31, %p32
    %p34 = scmp.ne.s32.totalorder %s23, %s24
    %p35 = scmp.eq.s32.totalorder %s15, 0
    %p36 = por %p34, %p35
    %p37 = scmp.ne.s32.totalorder %s23, %s24
    %p38 = scmp.eq.s32.totalorder %s16, 1
    %p39 = por %p37, %p38
    %p41 = scmp.ne.s32.totalorder %s24, %s40
    %p42 = scmp.eq.s32.totalorder %s16, 0
    %p43 = por %p41, %p42
    %s45 = sadd.s32 %s44, 1
    %p48 = scmp.eq.s32.totalorder %s10, 1
    %p49 = scmp.ne.s32.totalorder %s44, %s46
    %p50 = scmp.eq.s32.totalorder %s10, 0
    %p51 = por %p49, %p50
    %p52 = scmp.ne.s32.totalorder %s44, %s46
    %p53 = scmp.eq.s32.totalorder %s15, 1
    %p54 = por %p52, %p53
    %p55 = scmp.ne.s32.totalorder %s46, %s47
    %p56 = scmp.eq.s32.totalorder %s15, 0
    %p57 = por %p55, %p56
    %p58 = scmp.ne.s32.totalorder %s46, %s47
    %p59 = scmp.eq.s32.totalorder %s16, 1
    %p60 = por %p58, %p59
    %p62 = scmp.ne.s32.totalorder %s47, %s61
    %p63 = scmp.eq.s32.totalorder %s16, 0
    %p64 = por %p62, %p63
    %s66 = sadd.s32 %s65, 1
    %p69 = scmp.eq.s32.totalorder %s10, 1
    %p70 = scmp.ne.s32.totalorder %s65, %s67
    %p71 = scmp.eq.s32.totalorder %s10, 0
    %p72 = por %p70, %p71
    %p73 = scmp.ne.s32.totalorder %s65, %s67
    %p74 = scmp.eq.s32.totalorder %s15, 1
    %p75 = por %p73, %p74
    %p76 = scmp.ne.s32.totalorder %s67, %s68
    %p77 = scmp.eq.s32.totalorder %s15, 0
    %p78 = por %p76, %p77
    %p79 = scmp.ne.s32.totalorder %s67, %s68
    %p80 = scmp.eq.s32.totalorder %s16, 1
    %p81 = por %p79, %p80
    %p83 = scmp.ne.s32.totalorder %s68, %s82
    %p84 = scmp.eq.s32.totalorder %s16, 0
    %p85 = por %p83, %p84
    %s87 = sadd.s32 %s86, 1
    %p90 = scmp.eq.s32.totalorder %s10, 1
    %p91 = scmp.ne.s32.totalorder %s86, %s88
    %p92 = scmp.eq.s32.totalorder %s10, 0
    %p93 = por %p91, %p92
    %p94 = scmp.ne.s32.totalorder %s86, %s88
    %p95 = scmp.eq.s32.totalorder %s15, 1
    %p96 = por %p94, %p95
    %p97 = scmp.ne.s32.totalorder %s88, %s89
    %p98 = scmp.eq.s32.totalorder %s15, 0
    %p99 = por %p97, %p98
    %p100 = scmp.ne.s32.totalorder %s88, %s89
    %p101 = scmp.eq.s32.totalorder %s16, 1
    %p102 = por %p100, %p101
    %p104 = scmp.ne.s32.totalorder %s89, %s103
    %p105 = scmp.eq.s32.totalorder %s16, 0
    %p106 = por %p104, %p105
    %s107 = ssub.s32 %s10, %s17
    %p108 = scmp.eq.s32.totalorder %s107, 0
    %s110 = sadd.s32 %s109, 1
    %s111 = scalar_select %p108, %s109, %s110
    %p114 = pneg %p108
    %p115 = scmp.eq.s32.totalorder %s10, 1
    %p116 = por %p114, %p115
    %p117 = scmp.ne.s32.totalorder %s109, %s112
    %p118 = scmp.eq.s32.totalorder %s10, 0
    %p119 = por %p117, %p118
    %p120 = scmp.ne.s32.totalorder %s109, %s112
    %p121 = scmp.eq.s32.totalorder %s15, 1
    %p122 = por %p120, %p121
    %p123 = scmp.ne.s32.totalorder %s112, %s113
    %p124 = scmp.eq.s32.totalorder %s15, 0
    %p125 = por %p123, %p124
    %p126 = scmp.ne.s32.totalorder %s112, %s113
    %p127 = scmp.eq.s32.totalorder %s16, 1
    %p128 = por %p126, %p127
    %p130 = scmp.ne.s32.totalorder %s113, %s129
    %p131 = scmp.eq.s32.totalorder %s16, 0
    %p132 = por %p130, %p131
    %p133 = scmp.le.s32.totalorder 1, %s10
    %p134 = scmp.lt.s32.totalorder %s10, 3
    %p135 = pnand %p133, %p134
    %p136 = pneg %p135
    // Predicated region
    $region9: #{tpu_custom_call.1} parent=5 // pred_check
      _
    $region10: #{tpu_custom_call.1} parent=5 // pred_check_branch
      %138 = sbr.rel (%p135) target = $region12
    $region11: #{tpu_custom_call.1} parent=5 // pred_region
      %s139 = ssub.s32 %s10, 1
      // Predicated region
      $region13: #{tpu_custom_call.1} parent=11 // pred_check
        %p140 = pneg %p57
      $region14: #{tpu_custom_call.1} parent=11 // pred_check_branch
        %142 = sbr.rel (%p140) target = $region16
      $region15: #{tpu_custom_call.1} parent=11 // pred_region
        _
      $region16: #{tpu_custom_call.1} parent=11 // pred_fallthru
        _
      // Predicated region
      $region17: #{tpu_custom_call.1} parent=11 // pred_check
        %p143 = pneg %p78
      $region18: #{tpu_custom_call.1} parent=11 // pred_check_branch
        %145 = sbr.rel (%p143) target = $region20
      $region19: #{tpu_custom_call.1} parent=11 // pred_region
        _
      $region20: #{tpu_custom_call.1} parent=11 // pred_fallthru
        _
      // Predicated region
      $region21: #{tpu_custom_call.1} parent=11 // pred_check
        %p146 = pneg %p99
      $region22: #{tpu_custom_call.1} parent=11 // pred_check_branch
        %148 = sbr.rel (%p146) target = $region24
      $region23: #{tpu_custom_call.1} parent=11 // pred_region
        _
      $region24: #{tpu_custom_call.1} parent=11 // pred_fallthru
        _
    $region12: #{tpu_custom_call.1} parent=5 // pred_fallthru
      _
    %p149 = scmp.lt.s32.totalorder %s10, 2
    // Predicated region
    $region25: #{tpu_custom_call.1} parent=5 // pred_check
      %p150 = pneg %p149
    $region26: #{tpu_custom_call.1} parent=5 // pred_check_branch
      %152 = sbr.rel (%p150) target = $region28
    $region27: #{tpu_custom_call.1} parent=5 // pred_region
      // Predicated region
      $region29: #{tpu_custom_call.1} parent=27 // pred_check
        %p153 = pneg %p30
      $region30: #{tpu_custom_call.1} parent=27 // pred_check_branch
        %155 = sbr.rel (%p153) target = $region32
      $region31: #{tpu_custom_call.1} parent=27 // pred_region
        %s156 = smul.u32 4, %s10
        %p157 = scmp.lt.s32.totalorder %s156, 7
        %s158 = scalar_select %p157, %s156, 7
        %s159 = smul.addr %s158, 2
        %s160 = smul.addr %s159, 8
        %s161 = scalar_lea.vmem %s0, %s160
        %s162 = smul.u32 4, %s10
      $region32: #{tpu_custom_call.1} parent=27 // pred_fallthru
        _
    $region28: #{tpu_custom_call.1} parent=5 // pred_fallthru
      _
    %p163 = scmp.le.s32.totalorder 1, %s10
    %p164 = scmp.lt.s32.totalorder %s10, 3
    %p165 = pnand %p163, %p164
    %p166 = pneg %p165
    // Predicated region
    $region33: #{tpu_custom_call.1} parent=5 // pred_check
      _
    $region34: #{tpu_custom_call.1} parent=5 // pred_check_branch
      %168 = sbr.rel (%p165) target = $region36
    $region35: #{tpu_custom_call.1} parent=5 // pred_region
      %s169 = ssub.s32 %s10, 1
      %s170 = smul.u32 4, %s15
      %p171 = scmp.lt.s32.totalorder %s170, 7
      %s172 = scalar_select %p171, %s170, 7
      %s173 = smul.addr %s172, 2
      %s174 = smul.addr %s173, 8
      %s175 = scalar_lea.vmem %s0, %s174
      %p176 = pneg %p36
      %p177 = pneg %p33
      %p178 = pneg %p57
      %p179 = pneg %p54
      %p180 = pneg %p78
      %p181 = pneg %p75
      %p182 = pneg %p99
      %p183 = pneg %p96
      %p184 = pneg %p125
      %p185 = pneg %p122
      %s186 = smul.u32 16, %s15
      %p187 = scmp.lt.s32.totalorder %s186, 31
      %s188 = scalar_select %p187, %s186, 31
      %s189 = smul.addr %s188, 4
      %s190 = scalar_lea.vmem %s4, %s189
      %s191 = smul.u32 4, %s15
      %p192 = scmp.lt.s32.totalorder %s191, 7
      %s193 = scalar_select %p192, %s191, 7
      %s194 = smul.addr %s193, 2
      %s195 = smul.addr %s194, 8
      %s196 = scalar_lea.vmem %s0, %s195
      %s197 = smul.u32 4, %s15
      %s198 = smul.u32 16, %s15
      %p199 = scmp.lt.s32.totalorder %s198, 31
      %s200 = scalar_select %p199, %s198, 31
      %s201 = smul.addr %s200, 4
      %s202 = scalar_lea.vmem %s4, %s201
      %s203 = smul.u32 16, %s15
      %v205 = vld [vmem:[%s196] sm:$0xff]
      %v206 = vld [vmem:[%s196 + $0x8] sm:$0xff]
      %v207 = vld [vmem:[%s196 + $0x10] sm:$0xff]
      %v208 = vld [vmem:[%s196 + $0x18] sm:$0xff]
      %v209 = vld [vmem:[%s196 + $0x20] sm:$0xff]
      %v210 = vld [vmem:[%s196 + $0x28] sm:$0xff]
      %v211 = vld [vmem:[%s196 + $0x30] sm:$0xff]
      %v212 = vld [vmem:[%s196 + $0x38] sm:$0xff]
      %v213 = vunpack.c.l.s8.bf16 %v205
      %v214 = vunpack.c.l.s8.bf16 %v206
      %v215 = vunpack.c.h.s8.bf16 %v205
      %v216 = vunpack.c.h.s8.bf16 %v206
      %v217 = vunpack.c.l.s8.bf16 %v207
      %v218 = vunpack.c.l.s8.bf16 %v208
      %v219 = vunpack.c.h.s8.bf16 %v207
      %v220 = vunpack.c.h.s8.bf16 %v208
      %v221 = vunpack.c.l.s8.bf16 %v209
      %v222 = vunpack.c.l.s8.bf16 %v210
      %v223 = vunpack.c.h.s8.bf16 %v209
      %v224 = vunpack.c.h.s8.bf16 %v210
      %v225 = vunpack.c.l.s8.bf16 %v211
      %v226 = vunpack.c.l.s8.bf16 %v212
      %v227 = vunpack.c.h.s8.bf16 %v211
      %v228 = vunpack.c.h.s8.bf16 %v212
      %v229 = vld [vmem:[%s1] sm:$0xf]
      %v230 = vld [vmem:[%s1 + $0x4] sm:$0xf]
      %v231 = vld [vmem:[%s1 + $0x8] sm:$0xf]
      %v232 = vld [vmem:[%s1 + $0xc] sm:$0xf]
      %v233 = vld [vmem:[%s1 + $0x10] sm:$0xf]
      %v234 = vld [vmem:[%s1 + $0x14] sm:$0xf]
      %v235 = vld [vmem:[%s1 + $0x18] sm:$0xf]
      %v236 = vld [vmem:[%s1 + $0x1c] sm:$0xf]
      %v237 = vld [vmem:[%s1 + $0x20] sm:$0xf]
      %v238 = vld [vmem:[%s1 + $0x24] sm:$0xf]
      %v239 = vld [vmem:[%s1 + $0x28] sm:$0xf]
      %v240 = vld [vmem:[%s1 + $0x2c] sm:$0xf]
      %v241 = vld [vmem:[%s1 + $0x30] sm:$0xf]
      %v242 = vld [vmem:[%s1 + $0x34] sm:$0xf]
      %v243 = vld [vmem:[%s1 + $0x38] sm:$0xf]
      %v244 = vld [vmem:[%s1 + $0x3c] sm:$0xf]
      %v245 = vld [vmem:[%s1 + $0x40] sm:$0xf]
      %v246 = vld [vmem:[%s1 + $0x44] sm:$0xf]
      %v247 = vld [vmem:[%s1 + $0x48] sm:$0xf]
      %v248 = vld [vmem:[%s1 + $0x4c] sm:$0xf]
      %v249 = vld [vmem:[%s1 + $0x50] sm:$0xf]
      %v250 = vld [vmem:[%s1 + $0x54] sm:$0xf]
      %v251 = vld [vmem:[%s1 + $0x58] sm:$0xf]
      %v252 = vld [vmem:[%s1 + $0x5c] sm:$0xf]
      %v253 = vld [vmem:[%s1 + $0x60] sm:$0xf]
      %v254 = vld [vmem:[%s1 + $0x64] sm:$0xf]
      %v255 = vld [vmem:[%s1 + $0x68] sm:$0xf]
      %v256 = vld [vmem:[%s1 + $0x6c] sm:$0xf]
      %v257 = vld [vmem:[%s1 + $0x70] sm:$0xf]
      %v258 = vld [vmem:[%s1 + $0x74] sm:$0xf]
      %v259 = vld [vmem:[%s1 + $0x78] sm:$0xf]
      %v260 = vld [vmem:[%s1 + $0x7c] sm:$0xf]
      %v261 = vld [vmem:[%s3] sm:$0x1]
      %v262 = vlaneseq
      %v263 = vshrl.u32 %v262, 7
      %v264 = vsub.s32 0, %v263
      %v265 = vrot.slane %v261, %v264
      %v298 = vunpack.c.l.b16 %v229
      %v299 = vunpack.c.l.b16 %v230
      %v300 = vunpack.c.l.b16 %v231
      %v301 = vunpack.c.l.b16 %v232
      %v302 = vunpack.c.l.b16 %v233
      %v303 = vunpack.c.l.b16 %v234
      %v304 = vunpack.c.l.b16 %v235
      %v305 = vunpack.c.l.b16 %v236
      %v306 = vunpack.c.l.b16 %v237
      %v307 = vunpack.c.l.b16 %v238
      %v308 = vunpack.c.l.b16 %v239
      %v309 = vunpack.c.l.b16 %v240
      %v310 = vunpack.c.l.b16 %v241
      %v311 = vunpack.c.l.b16 %v242
      %v312 = vunpack.c.l.b16 %v243
      %v313 = vunpack.c.l.b16 %v244
      %v314 = vunpack.c.l.b16 %v245
      %v315 = vunpack.c.l.b16 %v246
      %v316 = vunpack.c.l.b16 %v247
      %v317 = vunpack.c.l.b16 %v248
      %v318 = vunpack.c.l.b16 %v249
      %v319 = vunpack.c.l.b16 %v250
      %v320 = vunpack.c.l.b16 %v251
      %v321 = vunpack.c.l.b16 %v252
      %v322 = vunpack.c.l.b16 %v253
      %v323 = vunpack.c.l.b16 %v254
      %v324 = vunpack.c.l.b16 %v255
      %v325 = vunpack.c.l.b16 %v256
      %v326 = vunpack.c.l.b16 %v257
      %v327 = vunpack.c.l.b16 %v258
      %v328 = vunpack.c.l.b16 %v259
      %v329 = vunpack.c.l.b16 %v260
      %v330 = vpack.c.b16 %v299, %v298
      %v331 = vpack.c.b16 %v301, %v300
      %v332 = vpack.c.b16 %v303, %v302
      %v333 = vpack.c.b16 %v305, %v304
      %v334 = vpack.c.b16 %v307, %v306
      %v335 = vpack.c.b16 %v309, %v308
      %v336 = vpack.c.b16 %v311, %v310
      %v337 = vpack.c.b16 %v313, %v312
      %v338 = vpack.c.b16 %v315, %v314
      %v339 = vpack.c.b16 %v317, %v316
      %v340 = vpack.c.b16 %v319, %v318
      %v341 = vpack.c.b16 %v321, %v320
      %v342 = vpack.c.b16 %v323, %v322
      %v343 = vpack.c.b16 %v325, %v324
      %v344 = vpack.c.b16 %v327, %v326
      %v345 = vpack.c.b16 %v329, %v328
      %362 = vmatprep.subr.bf16.mxu0 0
      %363 = vmatpush1.bf16.msra.mxu0 %v337
      %364 = vmatprep.subr.bf16.mxu0 0
      %365 = vmatpush1.bf16.msra.mxu0 %v336
      %366 = vmatprep.subr.bf16.mxu0 0
      %367 = vmatpush1.bf16.msra.mxu0 %v335
      %368 = vmatprep.subr.bf16.mxu0 0
      %369 = vmatpush1.bf16.msra.mxu0 %v334
      %370 = vmatprep.subr.bf16.mxu0 0
      %371 = vmatpush1.bf16.msra.mxu0 %v333
      %372 = vmatprep.subr.bf16.mxu0 0
      %373 = vmatpush1.bf16.msra.mxu0 %v332
      %374 = vmatprep.subr.bf16.mxu0 0
      %375 = vmatpush1.bf16.msra.mxu0 %v331
      %376 = vmatprep.subr.bf16.mxu0 0
      %377 = vmatpush1.bf16.msra.mxu0 %v330
      %378 = vmatprep.subr.bf16.mxu0 0
      %379 = vmatpush2.bf16.msra.mxu0 %v345
      %380 = vmatprep.subr.bf16.mxu0 0
      %381 = vmatpush2.bf16.msra.mxu0 %v344
      %382 = vmatprep.subr.bf16.mxu0 0
      %383 = vmatpush2.bf16.msra.mxu0 %v343
      %384 = vmatprep.subr.bf16.mxu0 0
      %385 = vmatpush2.bf16.msra.mxu0 %v342
      %386 = vmatprep.subr.bf16.mxu0 0
      %387 = vmatpush2.bf16.msra.mxu0 %v341
      %388 = vmatprep.subr.bf16.mxu0 0
      %389 = vmatpush2.bf16.msra.mxu0 %v340
      %390 = vmatprep.subr.bf16.mxu0 0
      %391 = vmatpush2.bf16.msra.mxu0 %v339
      %392 = vmatprep.subr.bf16.mxu0 0
      %393 = vmatpush2.bf16.msra.mxu0 %v338
      %394 = vmatprep.mubr.bf16.mxu0 %v214
      %395 = vmatmul.mubr.bf16.gmra.mxu0 %v213
      %v396 = vpop.f32.mrf.mxu0
      %v397 = vadd.f32 %v265, %v396
      %v398 = vpop.f32.mrf.mxu0
      %v399 = vpop.f32.mrf.mxu0
      %v400 = vadd.f32 %v265, %v399
      %v401 = vpop.f32.mrf.mxu0
      %402 = vmatprep.mubr.bf16.mxu0 %v216
      %403 = vmatmul.mubr.bf16.gmra.mxu0 %v215
      %v404 = vpop.f32.mrf.mxu0
      %v405 = vadd.f32 %v265, %v404
      %v406 = vpop.f32.mrf.mxu0
      %v407 = vpop.f32.mrf.mxu0
      %v408 = vadd.f32 %v265, %v407
      %v409 = vpop.f32.mrf.mxu0
      %410 = vmatprep.mubr.bf16.mxu0 %v218
      %411 = vmatmul.mubr.bf16.gmra.mxu0 %v217
      %v412 = vpop.f32.mrf.mxu0
      %v413 = vadd.f32 %v265, %v412
      %v414 = vpop.f32.mrf.mxu0
      %v415 = vpop.f32.mrf.mxu0
      %v416 = vadd.f32 %v265, %v415
      %v417 = vpop.f32.mrf.mxu0
      %418 = vmatprep.mubr.bf16.mxu0 %v220
      %419 = vmatmul.mubr.bf16.gmra.mxu0 %v219
      %v420 = vpop.f32.mrf.mxu0
      %v421 = vadd.f32 %v265, %v420
      %v422 = vpop.f32.mrf.mxu0
      %v423 = vpop.f32.mrf.mxu0
      %v424 = vadd.f32 %v265, %v423
      %v425 = vpop.f32.mrf.mxu0
      %426 = vmatprep.mubr.bf16.mxu0 %v222
      %427 = vmatmul.mubr.bf16.gmra.mxu0 %v221
      %v428 = vpop.f32.mrf.mxu0
      %v429 = vadd.f32 %v265, %v428
      %v430 = vpop.f32.mrf.mxu0
      %v431 = vpop.f32.mrf.mxu0
      %v432 = vadd.f32 %v265, %v431
      %v433 = vpop.f32.mrf.mxu0
      %434 = vmatprep.mubr.bf16.mxu0 %v224
      %435 = vmatmul.mubr.bf16.gmra.mxu0 %v223
      %v436 = vpop.f32.mrf.mxu0
      %v437 = vadd.f32 %v265, %v436
      %v438 = vpop.f32.mrf.mxu0
      %v439 = vpop.f32.mrf.mxu0
      %v440 = vadd.f32 %v265, %v439
      %v441 = vpop.f32.mrf.mxu0
      %442 = vmatprep.mubr.bf16.mxu0 %v226
      %443 = vmatmul.mubr.bf16.gmra.mxu0 %v225
      %v444 = vpop.f32.mrf.mxu0
      %v445 = vadd.f32 %v265, %v444
      %v446 = vpop.f32.mrf.mxu0
      %v447 = vpop.f32.mrf.mxu0
      %v448 = vadd.f32 %v265, %v447
      %v449 = vpop.f32.mrf.mxu0
      %450 = vmatprep.mubr.bf16.mxu0 %v228
      %451 = vmatmul.mubr.bf16.gmra.mxu0 %v227
      %v452 = vpop.f32.mrf.mxu0
      %v453 = vadd.f32 %v265, %v452
      %v454 = vpop.f32.mrf.mxu0
      %v455 = vpop.f32.mrf.mxu0
      %v456 = vadd.f32 %v265, %v455
      %v457 = vpop.f32.mrf.mxu0
      %458 = vdwg.mxu0
      %v459 = vmax.f32 %v397, 0.0
      %v460 = vmax.f32 %v400, 0.0
      %v461 = vmax.f32 %v405, 0.0
      %v462 = vmax.f32 %v408, 0.0
      %v463 = vmax.f32 %v413, 0.0
      %v464 = vmax.f32 %v416, 0.0
      %v465 = vmax.f32 %v421, 0.0
      %v466 = vmax.f32 %v424, 0.0
      %v467 = vmax.f32 %v429, 0.0
      %v468 = vmax.f32 %v432, 0.0
      %v469 = vmax.f32 %v437, 0.0
      %v470 = vmax.f32 %v440, 0.0
      %v471 = vmax.f32 %v445, 0.0
      %v472 = vmax.f32 %v448, 0.0
      %v473 = vmax.f32 %v453, 0.0
      %v474 = vmax.f32 %v456, 0.0
      %v475 = vpack.c.bf16 %v460, %v459
      %v476 = vpack.c.bf16 %v462, %v461
      %v477 = vpack.c.bf16 %v464, %v463
      %v478 = vpack.c.bf16 %v466, %v465
      %v479 = vpack.c.bf16 %v468, %v467
      %v480 = vpack.c.bf16 %v470, %v469
      %v481 = vpack.c.bf16 %v472, %v471
      %v482 = vpack.c.bf16 %v474, %v473
      %v483 = vld [vmem:[%s2] sm:$0xf]
      %v484 = vld [vmem:[%s2 + $0x4] sm:$0xf]
      %v485 = vld [vmem:[%s2 + $0x8] sm:$0xf]
      %v486 = vld [vmem:[%s2 + $0xc] sm:$0xf]
      %v487 = vld [vmem:[%s2 + $0x10] sm:$0xf]
      %v488 = vld [vmem:[%s2 + $0x14] sm:$0xf]
      %v489 = vld [vmem:[%s2 + $0x18] sm:$0xf]
      %v490 = vld [vmem:[%s2 + $0x1c] sm:$0xf]
      %v491 = vld [vmem:[%s3 + $0x1] sm:$0x1]
      %v492 = vlaneseq
      %v493 = vshrl.u32 %v492, 7
      %v494 = vsub.s32 0, %v493
      %v495 = vrot.slane %v491, %v494
      %v504 = vunpack.c.l.b16 %v483
      %v505 = vunpack.c.l.b16 %v484
      %v506 = vunpack.c.l.b16 %v485
      %v507 = vunpack.c.l.b16 %v486
      %v508 = vunpack.c.l.b16 %v487
      %v509 = vunpack.c.l.b16 %v488
      %v510 = vunpack.c.l.b16 %v489
      %v511 = vunpack.c.l.b16 %v490
      %v512 = vpack.c.b16 %v505, %v504
      %v513 = vpack.c.b16 %v507, %v506
      %v514 = vpack.c.b16 %v509, %v508
      %v515 = vpack.c.b16 %v511, %v510
      %vm520 = vcmask 523264
      %v522 = vsel %vm520, %v475, 0
      %v525 = vsel %vm520, %v476, 0
      %v528 = vsel %vm520, %v477, 0
      %v531 = vsel %vm520, %v478, 0
      %v534 = vsel %vm520, %v479, 0
      %v537 = vsel %vm520, %v480, 0
      %v540 = vsel %vm520, %v481, 0
      %v543 = vsel %vm520, %v482, 0
      %545 = vmatprep.subr.bf16.mxu0 0
      %546 = vmatpush1.bf16.msra.mxu0 0
      %547 = vmatprep.subr.bf16.mxu0 0
      %548 = vmatpush1.bf16.msra.mxu0 0
      %549 = vmatprep.subr.bf16.mxu0 0
      %550 = vmatpush1.bf16.msra.mxu0 0
      %551 = vmatprep.subr.bf16.mxu0 0
      %552 = vmatpush1.bf16.msra.mxu0 0
      %553 = vmatprep.subr.bf16.mxu0 0
      %554 = vmatpush1.bf16.msra.mxu0 %v515
      %555 = vmatprep.subr.bf16.mxu0 0
      %556 = vmatpush1.bf16.msra.mxu0 %v514
      %557 = vmatprep.subr.bf16.mxu0 0
      %558 = vmatpush1.bf16.msra.mxu0 %v513
      %559 = vmatprep.subr.bf16.mxu0 0
      %560 = vmatpush1.bf16.msra.mxu0 %v512
      %561 = vmatprep.subr.bf16.mxu0 0
      %562 = vmatpush2.bf16.msra.mxu0 0
      %563 = vmatprep.subr.bf16.mxu0 0
      %564 = vmatpush2.bf16.msra.mxu0 0
      %565 = vmatprep.subr.bf16.mxu0 0
      %566 = vmatpush2.bf16.msra.mxu0 0
      %567 = vmatprep.subr.bf16.mxu0 0
      %568 = vmatpush2.bf16.msra.mxu0 0
      %569 = vmatprep.subr.bf16.mxu0 0
      %570 = vmatpush2.bf16.msra.mxu0 0
      %571 = vmatprep.subr.bf16.mxu0 0
      %572 = vmatpush2.bf16.msra.mxu0 0
      %573 = vmatprep.subr.bf16.mxu0 0
      %574 = vmatpush2.bf16.msra.mxu0 0
      %575 = vmatprep.subr.bf16.mxu0 0
      %576 = vmatpush2.bf16.msra.mxu0 0
      %577 = vmatprep.mubr.bf16.mxu0 0
      %578 = vmatmul.mubr.bf16.gmra.mxu0 %v522
      %v579 = vpop.f32.mrf.mxu0
      %v580 = vadd.f32 %v495, %v579
      %v581 = vpop.f32.mrf.mxu0
      %v582 = vpop.f32.mrf.mxu0
      %v583 = vadd.f32 %v495, %v582
      %v584 = vpop.f32.mrf.mxu0
      %585 = vmatprep.mubr.bf16.mxu0 0
      %586 = vmatmul.mubr.bf16.gmra.mxu0 %v525
      %v587 = vpop.f32.mrf.mxu0
      %v588 = vadd.f32 %v495, %v587
      %v589 = vpop.f32.mrf.mxu0
      %v590 = vpop.f32.mrf.mxu0
      %v591 = vadd.f32 %v495, %v590
      %v592 = vpop.f32.mrf.mxu0
      %593 = vmatprep.mubr.bf16.mxu0 0
      %594 = vmatmul.mubr.bf16.gmra.mxu0 %v528
      %v595 = vpop.f32.mrf.mxu0
      %v596 = vadd.f32 %v495, %v595
      %v597 = vpop.f32.mrf.mxu0
      %v598 = vpop.f32.mrf.mxu0
      %v599 = vadd.f32 %v495, %v598
      %v600 = vpop.f32.mrf.mxu0
      %601 = vmatprep.mubr.bf16.mxu0 0
      %602 = vmatmul.mubr.bf16.gmra.mxu0 %v531
      %v603 = vpop.f32.mrf.mxu0
      %v604 = vadd.f32 %v495, %v603
      %v605 = vpop.f32.mrf.mxu0
      %v606 = vpop.f32.mrf.mxu0
      %v607 = vadd.f32 %v495, %v606
      %v608 = vpop.f32.mrf.mxu0
      %609 = vmatprep.mubr.bf16.mxu0 0
      %610 = vmatmul.mubr.bf16.gmra.mxu0 %v534
      %v611 = vpop.f32.mrf.mxu0
      %v612 = vadd.f32 %v495, %v611
      %v613 = vpop.f32.mrf.mxu0
      %v614 = vpop.f32.mrf.mxu0
      %v615 = vadd.f32 %v495, %v614
      %v616 = vpop.f32.mrf.mxu0
      %617 = vmatprep.mubr.bf16.mxu0 0
      %618 = vmatmul.mubr.bf16.gmra.mxu0 %v537
      %v619 = vpop.f32.mrf.mxu0
      %v620 = vadd.f32 %v495, %v619
      %v621 = vpop.f32.mrf.mxu0
      %v622 = vpop.f32.mrf.mxu0
      %v623 = vadd.f32 %v495, %v622
      %v624 = vpop.f32.mrf.mxu0
      %625 = vmatprep.mubr.bf16.mxu0 0
      %626 = vmatmul.mubr.bf16.gmra.mxu0 %v540
      %v627 = vpop.f32.mrf.mxu0
      %v628 = vadd.f32 %v495, %v627
      %v629 = vpop.f32.mrf.mxu0
      %v630 = vpop.f32.mrf.mxu0
      %v631 = vadd.f32 %v495, %v630
      %v632 = vpop.f32.mrf.mxu0
      %633 = vmatprep.mubr.bf16.mxu0 0
      %634 = vmatmul.mubr.bf16.gmra.mxu0 %v543
      %v635 = vpop.f32.mrf.mxu0
      %v636 = vadd.f32 %v495, %v635
      %v637 = vpop.f32.mrf.mxu0
      %v638 = vpop.f32.mrf.mxu0
      %v639 = vadd.f32 %v495, %v638
      %v640 = vpop.f32.mrf.mxu0
      %641 = vdwg.mxu0
      %v642 = vmax.f32 %v580, 0.0
      %v643 = vmax.f32 %v583, 0.0
      %v644 = vmax.f32 %v588, 0.0
      %v645 = vmax.f32 %v591, 0.0
      %v646 = vmax.f32 %v596, 0.0
      %v647 = vmax.f32 %v599, 0.0
      %v648 = vmax.f32 %v604, 0.0
      %v649 = vmax.f32 %v607, 0.0
      %v650 = vmax.f32 %v612, 0.0
      %v651 = vmax.f32 %v615, 0.0
      %v652 = vmax.f32 %v620, 0.0
      %v653 = vmax.f32 %v623, 0.0
      %v654 = vmax.f32 %v628, 0.0
      %v655 = vmax.f32 %v631, 0.0
      %v656 = vmax.f32 %v636, 0.0
      %v657 = vmax.f32 %v639, 0.0
      %v658 = vld [vmem:[%s3 + $0x2] sm:$0x1]
      %v659 = vlaneseq
      %v660 = vshrl.u32 %v659, 7
      %v661 = vsub.s32 0, %v660
      %v662 = vrot.slane %v658, %v661
      %v663 = vmul.f32 %v642, %v662
      %v664 = vmul.f32 %v643, %v662
      %v665 = vmul.f32 %v644, %v662
      %v666 = vmul.f32 %v645, %v662
      %v667 = vmul.f32 %v646, %v662
      %v668 = vmul.f32 %v647, %v662
      %v669 = vmul.f32 %v648, %v662
      %v670 = vmul.f32 %v649, %v662
      %v671 = vmul.f32 %v650, %v662
      %v672 = vmul.f32 %v651, %v662
      %v673 = vmul.f32 %v652, %v662
      %v674 = vmul.f32 %v653, %v662
      %v675 = vmul.f32 %v654, %v662
      %v676 = vmul.f32 %v655, %v662
      %v677 = vmul.f32 %v656, %v662
      %v678 = vmul.f32 %v657, %v662
      %v679 = vld [vmem:[%s3 + $0x3] sm:$0x1]
      %v680 = vlaneseq
      %v681 = vshrl.u32 %v680, 7
      %v682 = vsub.s32 0, %v681
      %v683 = vrot.slane %v679, %v682
      %v684 = vadd.f32 %v663, %v683
      %v685 = vadd.f32 %v664, %v683
      %v686 = vadd.f32 %v665, %v683
      %v687 = vadd.f32 %v666, %v683
      %v688 = vadd.f32 %v667, %v683
      %v689 = vadd.f32 %v668, %v683
      %v690 = vadd.f32 %v669, %v683
      %v691 = vadd.f32 %v670, %v683
      %v692 = vadd.f32 %v671, %v683
      %v693 = vadd.f32 %v672, %v683
      %v694 = vadd.f32 %v673, %v683
      %v695 = vadd.f32 %v674, %v683
      %v696 = vadd.f32 %v675, %v683
      %v697 = vadd.f32 %v676, %v683
      %v698 = vadd.f32 %v677, %v683
      %v699 = vadd.f32 %v678, %v683
      %v700 = vpack.c.bf16 %v685, %v684
      %v701 = vpack.c.bf16 %v687, %v686
      %v702 = vpack.c.bf16 %v689, %v688
      %v703 = vpack.c.bf16 %v691, %v690
      %v704 = vpack.c.bf16 %v693, %v692
      %v705 = vpack.c.bf16 %v695, %v694
      %v706 = vpack.c.bf16 %v697, %v696
      %v707 = vpack.c.bf16 %v699, %v698
      %v708 = vld [vmem:[%s2 + $0x20] sm:$0xf]
      %v709 = vld [vmem:[%s2 + $0x24] sm:$0xf]
      %v710 = vld [vmem:[%s2 + $0x28] sm:$0xf]
      %v711 = vld [vmem:[%s2 + $0x2c] sm:$0xf]
      %v712 = vld [vmem:[%s2 + $0x30] sm:$0xf]
      %v713 = vld [vmem:[%s2 + $0x34] sm:$0xf]
      %v714 = vld [vmem:[%s2 + $0x38] sm:$0xf]
      %v715 = vld [vmem:[%s2 + $0x3c] sm:$0xf]
      %v724 = vunpack.c.l.b16 %v708
      %v725 = vunpack.c.l.b16 %v709
      %v726 = vunpack.c.l.b16 %v710
      %v727 = vunpack.c.l.b16 %v711
      %v728 = vunpack.c.l.b16 %v712
      %v729 = vunpack.c.l.b16 %v713
      %v730 = vunpack.c.l.b16 %v714
      %v731 = vunpack.c.l.b16 %v715
      %v732 = vpack.c.b16 %v725, %v724
      %v733 = vpack.c.b16 %v727, %v726
      %v734 = vpack.c.b16 %v729, %v728
      %v735 = vpack.c.b16 %v731, %v730
      %v741 = vsel %vm520, %v700, 0
      %v744 = vsel %vm520, %v701, 0
      %v747 = vsel %vm520, %v702, 0
      %v750 = vsel %vm520, %v703, 0
      %v753 = vsel %vm520, %v704, 0
      %v756 = vsel %vm520, %v705, 0
      %v759 = vsel %vm520, %v706, 0
      %v762 = vsel %vm520, %v707, 0
      %764 = vmatprep.subr.bf16.mxu0 0
      %765 = vmatpush1.bf16.msra.mxu0 0
      %766 = vmatprep.subr.bf16.mxu0 0
      %767 = vmatpush1.bf16.msra.mxu0 0
      %768 = vmatprep.subr.bf16.mxu0 0
      %769 = vmatpush1.bf16.msra.mxu0 0
      %770 = vmatprep.subr.bf16.mxu0 0
      %771 = vmatpush1.bf16.msra.mxu0 0
      %772 = vmatprep.subr.bf16.mxu0 0
      %773 = vmatpush1.bf16.msra.mxu0 %v735
      %774 = vmatprep.subr.bf16.mxu0 0
      %775 = vmatpush1.bf16.msra.mxu0 %v734
      %776 = vmatprep.subr.bf16.mxu0 0
      %777 = vmatpush1.bf16.msra.mxu0 %v733
      %778 = vmatprep.subr.bf16.mxu0 0
      %779 = vmatpush1.bf16.msra.mxu0 %v732
      %780 = vmatprep.subr.bf16.mxu0 0
      %781 = vmatpush2.bf16.msra.mxu0 0
      %782 = vmatprep.subr.bf16.mxu0 0
      %783 = vmatpush2.bf16.msra.mxu0 0
      %784 = vmatprep.subr.bf16.mxu0 0
      %785 = vmatpush2.bf16.msra.mxu0 0
      %786 = vmatprep.subr.bf16.mxu0 0
      %787 = vmatpush2.bf16.msra.mxu0 0
      %788 = vmatprep.subr.bf16.mxu0 0
      %789 = vmatpush2.bf16.msra.mxu0 0
      %790 = vmatprep.subr.bf16.mxu0 0
      %791 = vmatpush2.bf16.msra.mxu0 0
      %792 = vmatprep.subr.bf16.mxu0 0
      %793 = vmatpush2.bf16.msra.mxu0 0
      %794 = vmatprep.subr.bf16.mxu0 0
      %795 = vmatpush2.bf16.msra.mxu0 0
      %796 = vmatprep.mubr.bf16.mxu0 0
      %797 = vmatmul.mubr.bf16.gmra.mxu0 %v741
      %v798 = vpop.f32.mrf.mxu0
      %v799 = vadd.f32 0.0, %v798
      %v800 = vpop.f32.mrf.mxu0
      %v801 = vpop.f32.mrf.mxu0
      %v802 = vadd.f32 0.0, %v801
      %v803 = vpop.f32.mrf.mxu0
      %804 = vmatprep.mubr.bf16.mxu0 0
      %805 = vmatmul.mubr.bf16.gmra.mxu0 %v744
      %v806 = vpop.f32.mrf.mxu0
      %v807 = vadd.f32 0.0, %v806
      %v808 = vpop.f32.mrf.mxu0
      %v809 = vpop.f32.mrf.mxu0
      %v810 = vadd.f32 0.0, %v809
      %v811 = vpop.f32.mrf.mxu0
      %812 = vmatprep.mubr.bf16.mxu0 0
      %813 = vmatmul.mubr.bf16.gmra.mxu0 %v747
      %v814 = vpop.f32.mrf.mxu0
      %v815 = vadd.f32 0.0, %v814
      %v816 = vpop.f32.mrf.mxu0
      %v817 = vpop.f32.mrf.mxu0
      %v818 = vadd.f32 0.0, %v817
      %v819 = vpop.f32.mrf.mxu0
      %820 = vmatprep.mubr.bf16.mxu0 0
      %821 = vmatmul.mubr.bf16.gmra.mxu0 %v750
      %v822 = vpop.f32.mrf.mxu0
      %v823 = vadd.f32 0.0, %v822
      %v824 = vpop.f32.mrf.mxu0
      %v825 = vpop.f32.mrf.mxu0
      %v826 = vadd.f32 0.0, %v825
      %v827 = vpop.f32.mrf.mxu0
      %828 = vmatprep.mubr.bf16.mxu0 0
      %829 = vmatmul.mubr.bf16.gmra.mxu0 %v753
      %v830 = vpop.f32.mrf.mxu0
      %v831 = vadd.f32 0.0, %v830
      %v832 = vpop.f32.mrf.mxu0
      %v833 = vpop.f32.mrf.mxu0
      %v834 = vadd.f32 0.0, %v833
      %v835 = vpop.f32.mrf.mxu0
      %836 = vmatprep.mubr.bf16.mxu0 0
      %837 = vmatmul.mubr.bf16.gmra.mxu0 %v756
      %v838 = vpop.f32.mrf.mxu0
      %v839 = vadd.f32 0.0, %v838
      %v840 = vpop.f32.mrf.mxu0
      %v841 = vpop.f32.mrf.mxu0
      %v842 = vadd.f32 0.0, %v841
      %v843 = vpop.f32.mrf.mxu0
      %844 = vmatprep.mubr.bf16.mxu0 0
      %845 = vmatmul.mubr.bf16.gmra.mxu0 %v759
      %v846 = vpop.f32.mrf.mxu0
      %v847 = vadd.f32 0.0, %v846
      %v848 = vpop.f32.mrf.mxu0
      %v849 = vpop.f32.mrf.mxu0
      %v850 = vadd.f32 0.0, %v849
      %v851 = vpop.f32.mrf.mxu0
      %852 = vmatprep.mubr.bf16.mxu0 0
      %853 = vmatmul.mubr.bf16.gmra.mxu0 %v762
      %v854 = vpop.f32.mrf.mxu0
      %v855 = vadd.f32 0.0, %v854
      %v856 = vpop.f32.mrf.mxu0
      %v857 = vpop.f32.mrf.mxu0
      %v858 = vadd.f32 0.0, %v857
      %v859 = vpop.f32.mrf.mxu0
      %860 = vdwg.mxu0
      %v861 = vpack.c.bf16 %v802, %v799
      %v862 = vpack.c.bf16 %v810, %v807
      %v863 = vpack.c.bf16 %v818, %v815
      %v864 = vpack.c.bf16 %v826, %v823
      %v865 = vpack.c.bf16 %v834, %v831
      %v866 = vpack.c.bf16 %v842, %v839
      %v867 = vpack.c.bf16 %v850, %v847
      %v868 = vpack.c.bf16 %v858, %v855
      %v877 = vunpack.c.l.b16 %v861
      %v878 = vunpack.c.h.b16 %v861
      %v879 = vunpack.c.l.b16 %v862
      %v880 = vunpack.c.h.b16 %v862
      %v881 = vunpack.c.l.b16 %v863
      %v882 = vunpack.c.h.b16 %v863
      %v883 = vunpack.c.l.b16 %v864
      %v884 = vunpack.c.h.b16 %v864
      %v885 = vunpack.c.l.b16 %v865
      %v886 = vunpack.c.h.b16 %v865
      %v887 = vunpack.c.l.b16 %v866
      %v888 = vunpack.c.h.b16 %v866
      %v889 = vunpack.c.l.b16 %v867
      %v890 = vunpack.c.h.b16 %v867
      %v891 = vunpack.c.l.b16 %v868
      %v892 = vunpack.c.h.b16 %v868
      %v893 = vpack.c.b16 %v877, %v877
      %v894 = vpack.c.b16 %v878, %v878
      %v895 = vpack.c.b16 %v879, %v879
      %v896 = vpack.c.b16 %v880, %v880
      %v897 = vpack.c.b16 %v881, %v881
      %v898 = vpack.c.b16 %v882, %v882
      %v899 = vpack.c.b16 %v883, %v883
      %v900 = vpack.c.b16 %v884, %v884
      %v901 = vpack.c.b16 %v885, %v885
      %v902 = vpack.c.b16 %v886, %v886
      %v903 = vpack.c.b16 %v887, %v887
      %v904 = vpack.c.b16 %v888, %v888
      %v905 = vpack.c.b16 %v889, %v889
      %v906 = vpack.c.b16 %v890, %v890
      %v907 = vpack.c.b16 %v891, %v891
      %v908 = vpack.c.b16 %v892, %v892
      %vm925 = vcmask 519168
      %926 = vst.msk [vmem:[%s202] sm:$0xf] %vm925, %v893
      %927 = vst.msk [vmem:[%s202 + $0x4] sm:$0xf] %vm925, %v894
      %928 = vst.msk [vmem:[%s202 + $0x8] sm:$0xf] %vm925, %v895
      %929 = vst.msk [vmem:[%s202 + $0xc] sm:$0xf] %vm925, %v896
      %930 = vst.msk [vmem:[%s202 + $0x10] sm:$0xf] %vm925, %v897
      %931 = vst.msk [vmem:[%s202 + $0x14] sm:$0xf] %vm925, %v898
      %932 = vst.msk [vmem:[%s202 + $0x18] sm:$0xf] %vm925, %v899
      %933 = vst.msk [vmem:[%s202 + $0x1c] sm:$0xf] %vm925, %v900
      %934 = vst.msk [vmem:[%s202 + $0x20] sm:$0xf] %vm925, %v901
      %935 = vst.msk [vmem:[%s202 + $0x24] sm:$0xf] %vm925, %v902
      %936 = vst.msk [vmem:[%s202 + $0x28] sm:$0xf] %vm925, %v903
      %937 = vst.msk [vmem:[%s202 + $0x2c] sm:$0xf] %vm925, %v904
      %938 = vst.msk [vmem:[%s202 + $0x30] sm:$0xf] %vm925, %v905
      %939 = vst.msk [vmem:[%s202 + $0x34] sm:$0xf] %vm925, %v906
      %940 = vst.msk [vmem:[%s202 + $0x38] sm:$0xf] %vm925, %v907
      %941 = vst.msk [vmem:[%s202 + $0x3c] sm:$0xf] %vm925, %v908
      %s942 = smul.u32 16, %s15
      %p943 = scmp.lt.s32.totalorder %s942, 31
      %s944 = scalar_select %p943, %s942, 31
      %s945 = smul.addr %s944, 4
      %s946 = scalar_lea.vmem %s4, %s945
      // Predicated region
      $region37: #{tpu_custom_call.1} parent=35 // pred_check
        %p947 = pneg %p122
      $region38: #{tpu_custom_call.1} parent=35 // pred_check_branch
        %949 = sbr.rel (%p947) target = $region40
      $region39: #{tpu_custom_call.1} parent=35 // pred_region
        %s950 = smul.u32 16, %s15
      $region40: #{tpu_custom_call.1} parent=35 // pred_fallthru
        _
    $region36: #{tpu_custom_call.1} parent=5 // pred_fallthru
      _
    %p951 = scmp.le.s32.totalorder 2, %s10
    // Predicated region
    $region41: #{tpu_custom_call.1} parent=5 // pred_check
      %p952 = pneg %p951
    $region42: #{tpu_custom_call.1} parent=5 // pred_check_branch
      %954 = sbr.rel (%p952) target = $region44
    $region43: #{tpu_custom_call.1} parent=5 // pred_region
      %s955 = ssub.s32 %s10, 2
      // Predicated region
      $region45: #{tpu_custom_call.1} parent=43 // pred_check
        %p956 = pneg %p128
      $region46: #{tpu_custom_call.1} parent=43 // pred_check_branch
        %958 = sbr.rel (%p956) target = $region48
      $region47: #{tpu_custom_call.1} parent=43 // pred_region
        %s959 = smul.u32 16, %s16
        %p960 = scmp.lt.s32.totalorder %s959, 31
        %s961 = scalar_select %p960, %s959, 31
        %s962 = smul.addr %s961, 4
        %s963 = scalar_lea.vmem %s4, %s962
      $region48: #{tpu_custom_call.1} parent=43 // pred_fallthru
        _
    $region44: #{tpu_custom_call.1} parent=5 // pred_fallthru
      _
  $region6: #{tpu_custom_call.1} parent=0 // loop_footer
    %s14 = sadd.s32 1, %s10
  $region7: #{tpu_custom_call.1} parent=0 // loop_footer_branch
    %9 = sbr.rel target = $region3
  $region8: #{tpu_custom_call.1} parent=0 // loop_exit
    _

</llo_original>
